<compile_context>
chip_gen: v7x
topology: tpu7x:2x2x1
jax: 0.10.0
libtpu: 0.0.40
codegen_flags: <defaults>
</compile_context>

<pallas_src>
import functools
import math

import jax
import jax.numpy as jnp
from jax.experimental import pallas as pl
from jax.experimental.pallas import tpu as pltpu


# Safe on v7x (64 MiB physical VMEM); raise towards 96-112 MiB for v5e/v6e
# when sweeping 1024-class tiles.
_VMEM_LIMIT = 64 * 1024 * 1024


# ------------------------------ helpers ------------------------------

def _round_up(x, m):
    return ((x + m - 1) // m) * m


def _tile(dim, target, align):
    """Pick a block size: full dim if it fits, else an aligned target tile."""
    if dim <= target:
        return dim                      # block == full dim is always legal
    return max(align, (target // align) * align)


def _pad_to(x, axis, new_size):
    if x.shape[axis] == new_size:
        return x
    pads = [(0, 0)] * x.ndim
    pads[axis] = (0, new_size - x.shape[axis])
    return jnp.pad(x, pads)


def _prep_x(x, Kp, tm):
    """Cast activations to bf16 and align (M, K) to (tm, Kp).  K columns beyond
    the logical K are zeros by construction at every call site."""
    M, Kx = x.shape
    Mp = _round_up(M, tm)
    xp = x.astype(jnp.bfloat16)
    if Kx != Kp:
        xp = xp[:, :Kp] if Kx > Kp else _pad_to(xp, 1, Kp)
    if Mp != M:
        xp = _pad_to(xp, 0, Mp)
    return xp, M, Mp


# --------------------- one-time weight packing ---------------------

def pack_matmul_weight(w, tk_target=512, tn_target=512):
    """Compute-layout (K, N) weight -> bf16, padded ONCE to tile multiples."""
    K, N = w.shape
    tk = _tile(K, tk_target, 128)
    tn = _tile(N, tn_target, 128)
    Kp, Np = _round_up(K, tk), _round_up(N, tn)
    wp = w.astype(jnp.bfloat16)
    if (Kp, Np) != (K, N):
        wp = jnp.pad(wp, ((0, Kp - K), (0, Np - N)))
    return dict(w=wp, K=K, N=N, tk=tk, tn=tn, Kp=Kp, Np=Np)


def pack_fulln_weight(w, tk_target=512):
    """K-padded packing for the dense+ln fused matmul (full-H output tile)."""
    K, N = w.shape
    tk = _tile(K, tk_target, 128)
    Kp = _round_up(K, tk)
    wp = w.astype(jnp.bfloat16)
    if Kp != K:
        wp = jnp.pad(wp, ((0, Kp - K), (0, 0)))
    return dict(w=wp, K=K, N=N, tk=tk, Kp=Kp)


def pack_gate_weight(w0, w1, tk_target=512, tn_target=512):
    """Stack gate/linear (K, ffn) weights as (2, Kp, Np) bf16, padded ONCE."""
    K, N = w0.shape
    tk = _tile(K, tk_target, 128)
    tn = _tile(N, tn_target, 128)
    Kp, Np = _round_up(K, tk), _round_up(N, tn)
    w01 = jnp.stack([w0, w1], axis=0).astype(jnp.bfloat16)
    if (Kp, Np) != (K, N):
        w01 = jnp.pad(w01, ((0, 0), (0, Kp - K), (0, Np - N)))
    return dict(w=w01, K=K, N=N, tk=tk, tn=tn, Kp=Kp, Np=Np)


# ----------------------------- RMSNorm kernel -----------------------------

def _rmsnorm_kernel(x_ref, s_ref, b_ref, o_ref, *, eps):
    x = x_ref[...].astype(jnp.float32)
    var = jnp.mean(x * x, axis=-1, keepdims=True)
    o_ref[...] = (x * jax.lax.rsqrt(var + eps) * s_ref[...] + b_ref[...]).astype(o_ref.dtype)


def dssn_rmsnorm(x2d, scale, shift, eps, out_dtype=jnp.bfloat16):
    """DSSN RMSNorm with depth_scale/alpha folded into `scale`, beta into `shift`."""
    M, H = x2d.shape
    tm = _tile(M, 512, 8)
    Mp = _round_up(M, tm)
    xp = _pad_to(x2d, 0, Mp)
    out = pl.pallas_call(
        functools.partial(_rmsnorm_kernel, eps=float(eps)),
        out_shape=jax.ShapeDtypeStruct((Mp, H), out_dtype),
        grid=(Mp // tm,),
        in_specs=[pl.BlockSpec((tm, H), lambda i: (i, 0)),
                  pl.BlockSpec((1, H), lambda i: (0, 0)),
                  pl.BlockSpec((1, H), lambda i: (0, 0))],
        out_specs=pl.BlockSpec((tm, H), lambda i: (i, 0)),
        compiler_params=pltpu.CompilerParams(dimension_semantics=("parallel",)),
    )(xp, scale, shift)
    return out if Mp == M else out[:M]


# ----------------------- tiled matmul (bias/residual/scale) -----------------------

def _matmul_kernel(*refs, out_scale, has_bias, has_residual):
    x_ref, w_ref = refs[0], refs[1]
    pos = 2
    b_ref = r_ref = None
    if has_bias:
        b_ref = refs[pos]; pos += 1
    if has_residual:
        r_ref = refs[pos]; pos += 1
    o_ref = refs[pos]
    acc_ref = refs[pos + 1]

    @pl.when(pl.program_id(2) == 0)
    def _():
        acc_ref[...] = jnp.zeros_like(acc_ref)

    acc_ref[...] += jnp.dot(x_ref[...], w_ref[...],
                            preferred_element_type=jnp.float32)

    @pl.when(pl.program_id(2) == pl.num_programs(2) - 1)
    def _():
        y = acc_ref[...]
        if out_scale != 1.0:
            y = y * out_scale
        if has_bias:
            y = y + b_ref[...].astype(jnp.float32)
        if has_residual:
            y = y + r_ref[...].astype(jnp.float32)
        o_ref[...] = y.astype(o_ref.dtype)


def tiled_matmul(x, pw, bias=None, residual=None, out_scale=1.0,
                 out_dtype=jnp.float32, tm_target=512):
    """y = (x @ w) * out_scale (+ bias) (+ residual), weights pre-packed in pw."""
    K, N, tk, tn, Kp, Np = pw["K"], pw["N"], pw["tk"], pw["tn"], pw["Kp"], pw["Np"]
    tm = _tile(x.shape[0], tm_target, 8)
    xp, M, Mp = _prep_x(x, Kp, tm)

    args = [xp, pw["w"]]
    in_specs = [pl.BlockSpec((tm, tk), lambda i, j, k: (i, k)),
                pl.BlockSpec((tk, tn), lambda i, j, k: (k, j))]
    if bias is not None:                 # pre-padded (1, Np) f32 from prepare_params
        args.append(bias)
        in_specs.append(pl.BlockSpec((1, tn), lambda i, j, k: (0, j)))
    if residual is not None:
        rp = residual.astype(jnp.float32)
        if rp.shape != (Mp, Np):
            rp = _pad_to(_pad_to(rp, 0, Mp), 1, Np)
        args.append(rp)
        in_specs.append(pl.BlockSpec((tm, tn), lambda i, j, k: (i, j)))

    out = pl.pallas_call(
        functools.partial(_matmul_kernel, out_scale=float(out_scale),
                          has_bias=bias is not None,
                          has_residual=residual is not None),
        out_shape=jax.ShapeDtypeStruct((Mp, Np), out_dtype),
        grid=(Mp // tm, Np // tn, Kp // tk),
        in_specs=in_specs,
        out_specs=pl.BlockSpec((tm, tn), lambda i, j, k: (i, j)),
        scratch_shapes=[pltpu.VMEM((tm, tn), jnp.float32)],
        compiler_params=pltpu.CompilerParams(
            dimension_semantics=("parallel", "parallel", "arbitrary"),
            vmem_limit_bytes=_VMEM_LIMIT),
    )(*args)
    if (Mp, Np) != (M, N):
        out = out[:M, :N]
    return out


# -------- fused attention-dense + residual + post-attention RMSNorm --------

def _dense_res_ln_kernel(x_ref, w_ref, r_ref, s_ref, b_ref, y_ref, ln_ref, acc_ref, *, eps):
    @pl.when(pl.program_id(1) == 0)
    def _():
        acc_ref[...] = jnp.zeros_like(acc_ref)

    acc_ref[...] += jnp.dot(x_ref[...], w_ref[...],
                            preferred_element_type=jnp.float32)

    @pl.when(pl.program_id(1) == pl.num_programs(1) - 1)
    def _():
        y = acc_ref[...] + r_ref[...].astype(jnp.float32)      # ln_input (residual)
        y_ref[...] = y.astype(y_ref.dtype)
        var = jnp.mean(y * y, axis=-1, keepdims=True)
        ln_ref[...] = (y * jax.lax.rsqrt(var + eps) * s_ref[...] + b_ref[...]
                       ).astype(ln_ref.dtype)


def dense_residual_rmsnorm(ctx2d, pw, residual, scale, shift, eps, tm_target=256):
    """y = residual + ctx2d @ w ; ln = DSSN_RMSNorm(y).  Full-H output tile so the
    row reduction for the norm runs in the matmul finalize (saves one full (M,H)
    f32 write + read of ln_input)."""
    tk, Kp, N = pw["tk"], pw["Kp"], pw["N"]
    tm = _tile(ctx2d.shape[0], tm_target, 8)
    xp, M, Mp = _prep_x(ctx2d, Kp, tm)
    rp = _pad_to(residual.astype(jnp.float32), 0, Mp)

    y, ln = pl.pallas_call(
        functools.partial(_dense_res_ln_kernel, eps=float(eps)),
        out_shape=(jax.ShapeDtypeStruct((Mp, N), jnp.float32),
                   jax.ShapeDtypeStruct((Mp, N), jnp.bfloat16)),
        grid=(Mp // tm, Kp // tk),
        in_specs=[pl.BlockSpec((tm, tk), lambda i, k: (i, k)),
                  pl.BlockSpec((tk, N), lambda i, k: (k, 0)),
                  pl.BlockSpec((tm, N), lambda i, k: (i, 0)),
                  pl.BlockSpec((1, N), lambda i, k: (0, 0)),
                  pl.BlockSpec((1, N), lambda i, k: (0, 0))],
        out_specs=(pl.BlockSpec((tm, N), lambda i, k: (i, 0)),
                   pl.BlockSpec((tm, N), lambda i, k: (i, 0))),
        scratch_shapes=[pltpu.VMEM((tm, N), jnp.float32)],
        compiler_params=pltpu.CompilerParams(
            dimension_semantics=("parallel", "arbitrary"),
            vmem_limit_bytes=_VMEM_LIMIT),
    )(xp, pw["w"], rp, scale, shift)
    if Mp != M:
        y, ln = y[:M], ln[:M]
    return y, ln


# ----------------------- MLP h->4h fused SwiGLU kernel -----------------------

def _mlp_in_kernel(x_ref, w_ref, o_ref, acc0_ref, acc1_ref):
    @pl.when(pl.program_id(2) == 0)
    def _():
        acc0_ref[...] = jnp.zeros_like(acc0_ref)
        acc1_ref[...] = jnp.zeros_like(acc1_ref)

    x = x_ref[...]
    acc0_ref[...] += jnp.dot(x, w_ref[0], preferred_element_type=jnp.float32)
    acc1_ref[...] += jnp.dot(x, w_ref[1], preferred_element_type=jnp.float32)

    @pl.when(pl.program_id(2) == pl.num_programs(2) - 1)
    def _():
        g = acc0_ref[...]                               # f32 elementwise (v5e-safe)
        o_ref[...] = (g * jax.nn.sigmoid(g) * acc1_ref[...]).astype(o_ref.dtype)


def mlp_h_to_4h_swiglu(x, pw01, tm_target=512):
    """silu(x@w0)*(x@w1).  Output keeps the padded ffn width: the padded columns
    are exactly zero (padded gate/linear weight columns are zero) and the 4h->h
    weight K-padding matches, so no slice/re-pad is needed downstream."""
    tk, tn, Kp, Np = pw01["tk"], pw01["tn"], pw01["Kp"], pw01["Np"]
    tm = _tile(x.shape[0], tm_target, 8)
    xp, M, Mp = _prep_x(x, Kp, tm)

    out = pl.pallas_call(
        _mlp_in_kernel,
        out_shape=jax.ShapeDtypeStruct((Mp, Np), jnp.bfloat16),
        grid=(Mp // tm, Np // tn, Kp // tk),
        in_specs=[pl.BlockSpec((tm, tk), lambda i, j, k: (i, k)),
                  pl.BlockSpec((2, tk, tn), lambda i, j, k: (0, k, j))],
        out_specs=pl.BlockSpec((tm, tn), lambda i, j, k: (i, j)),
        scratch_shapes=[pltpu.VMEM((tm, tn), jnp.float32),
                        pltpu.VMEM((tm, tn), jnp.float32)],
        compiler_params=pltpu.CompilerParams(
            dimension_semantics=("parallel", "parallel", "arbitrary"),
            vmem_limit_bytes=_VMEM_LIMIT),
    )(xp, pw01["w"])
    return out if Mp == M else out[:M]


# ----------------------- flash attention (causal, MQA) -----------------------

def _flash_kernel(q_ref, k_ref, v_ref, o_ref, m_ref, l_ref, acc_ref,
                  *, out_scale, q_offset, rep):
    # q_ref/o_ref: (rep, tq, hd)  k_ref/v_ref: (tkv, hd)
    tq = q_ref.shape[1]
    tkv = k_ref.shape[0]
    qi = pl.program_id(2)
    ki = pl.program_id(3)

    @pl.when(ki == 0)
    def _():
        m_ref[...] = jnp.full_like(m_ref, -1e30)
        l_ref[...] = jnp.zeros_like(l_ref)
        acc_ref[...] = jnp.zeros_like(acc_ref)

    q_first = q_offset + qi * tq          # absolute position of first q row in this tile
    q_last = q_first + tq - 1
    k_first = ki * tkv
    k_last = k_first + tkv - 1

    def process(masked):
        k = k_ref[...]
        v = v_ref[...]
        if masked:
            row = q_first + jax.lax.broadcasted_iota(jnp.int32, (tq, tkv), 0)
            col = k_first + jax.lax.broadcasted_iota(jnp.int32, (tq, tkv), 1)
            keep = col <= row             # cache-aware causal mask
        for r in range(rep):              # static unroll over the MQA group's heads
            q = q_ref[r]                  # (tq, hd) bf16, already scaled by 1/sqrt(hd)
            s = jax.lax.dot_general(q, k, (((1,), (1,)), ((), ())),
                                    preferred_element_type=jnp.float32)
            if masked:
                s = jnp.where(keep, s, -1e30)
            m_prev = m_ref[r]
            m_new = jnp.maximum(m_prev, jnp.max(s, axis=-1, keepdims=True))
            alpha = jnp.exp(m_prev - m_new)
            p = jnp.exp(s - m_new)
            l_ref[r] = alpha * l_ref[r] + jnp.sum(p, axis=-1, keepdims=True)
            acc_ref[r] = alpha * acc_ref[r] + jax.lax.dot_general(
                p.astype(v.dtype), v, (((1,), (0,)), ((), ())),
                preferred_element_type=jnp.float32)
            m_ref[r] = m_new

    # interior blocks (fully below the diagonal): no masking work at all
    @pl.when(k_last <= q_first)
    def _():
        process(masked=False)

    # diagonal blocks: apply the causal mask
    @pl.when(jnp.logical_and(k_first <= q_last, k_last > q_first))
    def _():
        process(masked=True)

    @pl.when(ki == pl.num_programs(3) - 1)
    def _():
        for r in range(rep):
            o_ref[r] = ((acc_ref[r] / l_ref[r]) * out_scale).astype(o_ref.dtype)


def flash_mqa_attention(q5, k4, v4, *, cattn):
    """q5: (B, g, rep, Sq, hd) bf16 (pre-scaled by 1/sqrt(hd)),
    k4/v4: (B, g, Skv, hd) bf16.  Returns (B, g, rep, Sq, hd) bf16, scaled by cattn.

    The MQA group is folded into the Q/O block, so each K/V block is streamed
    from HBM once per group (not per head); the K/V index_map is clamped at the
    causal diagonal, so fully-masked KV blocks are never fetched (the pipeline
    dedupes consecutive identical block indices)."""
    B, g, rep, Sq, hd = q5.shape
    Skv = k4.shape[2]
    q_offset = Skv - Sq                                  # kv-cache length
    assert q_offset >= 0, "kv cache must not be shorter than the new query chunk"

    tq = _tile(Sq, 256, 8)
    tkv = _tile(Skv, 256, 8)
    Sqp, Skvp = _round_up(Sq, tq), _round_up(Skv, tkv)
    qp = _pad_to(q5, 3, Sqp)
    kp = _pad_to(k4, 2, Skvp)                            # zero-padded keys are masked
    vp = _pad_to(v4, 2, Skvp)

    def kv_index_map(b, gi, qi, ki):
        kmax = (q_offset + (qi + 1) * tq - 1) // tkv     # last block touching the diagonal
        return (b, gi, jnp.minimum(ki, kmax), 0)

    out = pl.pallas_call(
        functools.partial(_flash_kernel, out_scale=float(cattn),
                          q_offset=int(q_offset), rep=int(rep)),
        out_shape=jax.ShapeDtypeStruct((B, g, rep, Sqp, hd), jnp.bfloat16),
        grid=(B, g, Sqp // tq, Skvp // tkv),
        in_specs=[
            pl.BlockSpec((None, None, rep, tq, hd), lambda b, gi, qi, ki: (b, gi, 0, qi, 0)),
            pl.BlockSpec((None, None, tkv, hd), kv_index_map),
            pl.BlockSpec((None, None, tkv, hd), kv_index_map),
        ],
        out_specs=pl.BlockSpec((None, None, rep, tq, hd),
                               lambda b, gi, qi, ki: (b, gi, 0, qi, 0)),
        scratch_shapes=[pltpu.VMEM((rep, tq, 1), jnp.float32),
                        pltpu.VMEM((rep, tq, 1), jnp.float32),
                        pltpu.VMEM((rep, tq, hd), jnp.float32)],
        compiler_params=pltpu.CompilerParams(
            dimension_semantics=("parallel", "parallel", "parallel", "arbitrary"),
            vmem_limit_bytes=_VMEM_LIMIT),
    )(qp, kp, vp)
    return out[:, :, :, :Sq, :]


# ------------------------------ JAX glue ------------------------------

def build_rope_cache(seq_len, head_dim, base=10000.0):
    # ChatGLM: rotary dim = head_dim // 2; cache shape (S, rot_dim//2, 2)
    n_elem = head_dim // 2
    theta = 1.0 / (base ** (jnp.arange(0, n_elem, 2, dtype=jnp.float32) / n_elem))
    seq = jnp.arange(seq_len, dtype=jnp.float32)
    idx_theta = jnp.outer(seq, theta)
    return jnp.stack([jnp.cos(idx_theta), jnp.sin(idx_theta)], axis=-1)


def apply_rotary_pos_emb(x, rope):
    # x: (S, B, n, hd); rope: (S, half, 2) sliced by the caller to the ABSOLUTE
    # positions of the new tokens (offset by the kv-cache length when decoding).
    # TODO(synk): fuse the rotary rotation into the QKV matmul epilogue
    # (pltpu.roll even/odd swizzle) to avoid this stack/reshape HBM pass.
    S = x.shape[0]
    half = rope.shape[-2]
    rot_dim = half * 2
    x_rot, x_pass = x[..., :rot_dim], x[..., rot_dim:]
    xs = x_rot.astype(jnp.float32).reshape(x.shape[:-1] + (half, 2))
    rc = rope[:S].astype(jnp.float32).reshape(S, 1, 1, half, 2)
    o0 = xs[..., 0] * rc[..., 0] - xs[..., 1] * rc[..., 1]
    o1 = xs[..., 1] * rc[..., 0] + xs[..., 0] * rc[..., 1]
    out = jnp.stack([o0, o1], axis=-1).reshape(x.shape[:-1] + (rot_dim,))
    return jnp.concatenate([out.astype(x.dtype), x_pass], axis=-1)


def prepare_params(raw, cfg):
    """One-time conversion: PyTorch (N, K) weights -> compute layout, bf16,
    padded to tile multiples; depth_scale/alpha/beta folded into per-channel
    norm vectors; 1/sqrt(hd) folded into the Q slice of the QKV projection."""
    H = cfg["hidden_size"]
    nh, hd, ffn = cfg["num_heads"], cfg["head_dim"], cfg["ffn_hidden"]
    depth_scale = 1.0 + cfg["layer_number"] / cfg["num_layers"] * 0.3

    def ln_vectors(w, alpha, beta):
        scale = (w.astype(jnp.float32) *
                 (depth_scale * jnp.asarray(alpha, jnp.float32))).reshape(1, H)
        shift = jnp.broadcast_to(jnp.asarray(beta, jnp.float32), (1, H))
        return scale, shift

    ln1_s, ln1_b = ln_vectors(raw["ln1_w"], raw["ln1_alpha"], raw["ln1_beta"])
    ln2_s, ln2_b = ln_vectors(raw["ln2_w"], raw["ln2_alpha"], raw["ln2_beta"])

    q_sz = nh * hd
    attn_scale = 1.0 / math.sqrt(hd)
    qkv_w = raw["qkv_w"].astype(jnp.float32).at[:q_sz].multiply(attn_scale)
    qkv_b = raw["qkv_b"].astype(jnp.float32).at[:q_sz].multiply(attn_scale)

    qkv_pw = pack_matmul_weight(jnp.transpose(qkv_w))                    # (H, qkv_hidden)
    qkv_bias = jnp.pad(qkv_b.reshape(1, -1),
                       ((0, 0), (0, qkv_pw["Np"] - qkv_pw["N"])))

    dense_pw = pack_fulln_weight(jnp.transpose(raw["dense_w"]))          # (nh*hd, H)

    w_h_to_4h = raw["w_h_to_4h"]
    w01_pw = pack_gate_weight(jnp.transpose(w_h_to_4h[:ffn]),            # gate
                              jnp.transpose(w_h_to_4h[ffn:]))            # linear
    w2_pw = pack_matmul_weight(jnp.transpose(raw["w_4h_to_h"]))          # (ffn, H)
    # TODO(synk): on v7x, store w01/w2 in fp8 (bf16 activations, f32 accumulate).

    return dict(ln1_scale=ln1_s, ln1_shift=ln1_b, ln2_scale=ln2_s, ln2_shift=ln2_b,
                qkv=qkv_pw, qkv_bias=qkv_bias, dense=dense_pw, w01=w01_pw, w2=w2_pw)


def glm_block_forward(params, cfg, hidden_states, rope_cache, kv_cache=None, use_cache=True):
    # layout: hidden_states [S, B, H]; kv_cache (if given) is (B, g, S_cache, hd) bf16.
    S, B, H = hidden_states.shape
    nh, hd, g = cfg["num_heads"], cfg["head_dim"], cfg["mqa_groups"]
    rep = nh // g
    eps = cfg["eps"]
    M = S * B
    x2d = hidden_states.reshape(M, H)

    # ---- input DSSN RMSNorm (bf16 out feeds the QKV matmul) ----
    ln1 = dssn_rmsnorm(x2d, params["ln1_scale"], params["ln1_shift"], eps)

    # ---- QKV projection (bf16 out; 1/sqrt(hd) already folded into the Q slice) ----
    qkv = tiled_matmul(ln1, params["qkv"], bias=params["qkv_bias"],
                       out_dtype=jnp.bfloat16).reshape(S, B, -1)
    q_sz, kv_sz = nh * hd, g * hd
    q = qkv[..., :q_sz].reshape(S, B, nh, hd)
    k = qkv[..., q_sz:q_sz + kv_sz].reshape(S, B, g, hd)
    v = qkv[..., q_sz + kv_sz:].reshape(S, B, g, hd)

    q = apply_rotary_pos_emb(q, rope_cache)
    k = apply_rotary_pos_emb(k, rope_cache)

    # new-token layout plumbing only (the KV cache itself stays in (B, g, S, hd))
    q5 = jnp.transpose(q, (1, 2, 0, 3)).reshape(B, g, rep, S, hd)
    k_new = jnp.transpose(k, (1, 2, 0, 3))              # (B, g, S, hd)
    v_new = jnp.transpose(v, (1, 2, 0, 3))

    if kv_cache is not None:
        cache_k, cache_v = kv_cache
        # TODO(synk): replace concat with an in-place dynamic_update_slice into a
        # preallocated bf16 cache (pallas write kernel with input_output_aliases).
        k_full = jnp.concatenate([cache_k.astype(jnp.bfloat16), k_new], axis=2)
        v_full = jnp.concatenate([cache_v.astype(jnp.bfloat16), v_new], axis=2)
    else:
        k_full, v_full = k_new, v_new
    new_kv_cache = (k_full, v_full) if use_cache else None

    # ---- flash attention (MQA group folded into the Q tile, cattn in epilogue) ----
    ctx = flash_mqa_attention(q5, k_full, v_full, cattn=cfg["cattn"])   # (B,g,rep,Sq,hd)
    # TODO(synk): emit the context directly in (S, B, nh, hd) from the kernel to
    # drop this (new-token-sized) transpose as well.
    ctx2d = jnp.transpose(ctx, (3, 0, 1, 2, 4)).reshape(M, nh * hd)

    # ---- attention dense + first residual + post-attention RMSNorm, fused ----
    ln_input, ln2 = dense_residual_rmsnorm(ctx2d, params["dense"], x2d,
                                           params["ln2_scale"], params["ln2_shift"], eps)

    # ---- MLP: fused SwiGLU h->4h, then 4h->h with cmlp scale + residual fused ----
    h = mlp_h_to_4h_swiglu(ln2, params["w01"])                          # (M, ffn_p) bf16
    out2d = tiled_matmul(h, params["w2"], residual=ln_input,
                         out_scale=cfg["cmlp"], out_dtype=jnp.float32)

    return out2d.reshape(S, B, H), new_kv_cache


# ------------------------------ main ------------------------------

if __name__ == "__main__":
    S, B, H = 8, 2, 32
    nh, hd, g = 4, 8, 2          # num heads, head dim (kv_channels), MQA groups
    ffn = 64
    qkv_hidden = nh * hd + 2 * g * hd   # 64

    cfg = dict(hidden_size=H, num_heads=nh, head_dim=hd, mqa_groups=g, ffn_hidden=ffn,
               layer_number=1, num_layers=4, eps=1e-5, cattn=0.9, cmlp=0.8)

    key = jax.random.PRNGKey(0)
    keys = jax.random.split(key, 8)
    std = 0.02
    raw_params = {
        "ln1_w": jnp.ones((H,), jnp.float32),
        "ln1_alpha": jnp.float32(1.0),
        "ln1_beta": jnp.float32(0.0),
        "ln2_w": jnp.ones((H,), jnp.float32),
        "ln2_alpha": jnp.float32(1.0),
        "ln2_beta": jnp.float32(0.0),
        "qkv_w": std * jax.random.normal(keys[0], (qkv_hidden, H), jnp.float32),
        "qkv_b": std * jax.random.normal(keys[1], (qkv_hidden,), jnp.float32),
        "dense_w": std * jax.random.normal(keys[2], (H, nh * hd), jnp.float32),
        "w_h_to_4h": std * jax.random.normal(keys[3], (2 * ffn, H), jnp.float32),
        "w_4h_to_h": std * jax.random.normal(keys[4], (H, ffn), jnp.float32),
    }
    params = prepare_params(raw_params, cfg)

    hidden_states = jax.random.normal(keys[5], (S, B, H), jnp.float32)  # layout [S, B, H]
    rope_cache = build_rope_cache(S, hd)                                # (S, hd//4, 2)

    out, kv_cache = glm_block_forward(params, cfg, hidden_states, rope_cache,
                                      kv_cache=None, use_cache=True)
    jax.block_until_ready(out)
    jax.block_until_ready(kv_cache)
    assert out.shape == (S, B, H)
    assert kv_cache[0].shape == (B, g, S, hd) and kv_cache[1].shape == (B, g, S, hd)
    assert bool(jnp.all(jnp.isfinite(out)))
    print("KERNEL_OK")
</pallas_src>

<mosaic_0001>
module attributes {stable_mosaic.version = 11 : i64} {
  func.func @_rmsnorm_kernel(%arg0: i32, %arg1: memref<16x32xf32, #tpu.memory_space<vmem>>, %arg2: memref<1x32xf32, #tpu.memory_space<vmem>>, %arg3: memref<1x32xf32, #tpu.memory_space<vmem>>, %arg4: memref<16x32xbf16, #tpu.memory_space<vmem>>) attributes {dimension_semantics = [#tpu.dimension_semantics<parallel>], iteration_bounds = array<i64: 1>, scalar_prefetch = 0 : i64, scratch_operands = 0 : i64, tpu.core_type = #tpu.core_type<tc>, window_params = [{transform_indices = @transform_0, window_bounds = array<i64: 16, 32>}, {pipeline_mode = #tpu.pipeline_mode<synchronous>, transform_indices = @transform_1, window_bounds = array<i64: 1, 32>}, {pipeline_mode = #tpu.pipeline_mode<synchronous>, transform_indices = @transform_2, window_bounds = array<i64: 1, 32>}, {transform_indices = @transform_3, window_bounds = array<i64: 16, 32>}]} {
    %c0 = arith.constant 0 : index
    %c0_0 = arith.constant 0 : index
    %0 = vector.load %arg1[%c0, %c0_0] : memref<16x32xf32, #tpu.memory_space<vmem>>, vector<16x32xf32>
    %1 = arith.mulf %0, %0 : vector<16x32xf32>
    %cst = arith.constant dense<0.000000e+00> : vector<16xf32>
    %2 = vector.multi_reduction <add>, %1, %cst [1] : vector<16x32xf32> to vector<16xf32>
    %3 = vector.shape_cast %2 : vector<16xf32> to vector<16x1xf32>
    %cst_1 = arith.constant 3.200000e+01 : f32
    %4 = vector.broadcast %cst_1 : f32 to vector<16x1xf32>
    %5 = arith.divf %3, %4 : vector<16x1xf32>
    %cst_2 = arith.constant 9.99999974E-6 : f32
    %6 = vector.broadcast %cst_2 : f32 to vector<16x1xf32>
    %7 = arith.addf %5, %6 : vector<16x1xf32>
    %8 = math.rsqrt %7 : vector<16x1xf32>
    %9 = vector.broadcast %8 : vector<16x1xf32> to vector<16x32xf32>
    %10 = arith.mulf %0, %9 : vector<16x32xf32>
    %c0_3 = arith.constant 0 : index
    %c0_4 = arith.constant 0 : index
    %11 = vector.load %arg2[%c0_3, %c0_4] : memref<1x32xf32, #tpu.memory_space<vmem>>, vector<1x32xf32>
    %12 = vector.broadcast %11 : vector<1x32xf32> to vector<16x32xf32>
    %13 = arith.mulf %10, %12 : vector<16x32xf32>
    %c0_5 = arith.constant 0 : index
    %c0_6 = arith.constant 0 : index
    %14 = vector.load %arg3[%c0_5, %c0_6] : memref<1x32xf32, #tpu.memory_space<vmem>>, vector<1x32xf32>
    %15 = vector.broadcast %14 : vector<1x32xf32> to vector<16x32xf32>
    %16 = arith.addf %13, %15 : vector<16x32xf32>
    %17 = arith.truncf %16 : vector<16x32xf32> to vector<16x32xbf16>
    %c0_7 = arith.constant 0 : index
    %c0_8 = arith.constant 0 : index
    %18 = vector.load %arg4[%c0_7, %c0_8] : memref<16x32xbf16, #tpu.memory_space<vmem>>, vector<16x32xbf16>
    tpu.vector_store %arg4[%c0_7, %c0_8], %17 {strides = array<i32>} : memref<16x32xbf16, #tpu.memory_space<vmem>>, vector<16x32xbf16>,
    return
  }
  func.func @transform_0(%arg0: i32) -> (i32, i32) {
    %c0_i32 = arith.constant 0 : i32
    %c0_i32_0 = arith.constant 0 : i32
    return %arg0, %c0_i32 : i32, i32
  }
  func.func @transform_1(%arg0: i32) -> (i32, i32) {
    %c0_i32 = arith.constant 0 : i32
    %c0_i32_0 = arith.constant 0 : i32
    %c0_i32_1 = arith.constant 0 : i32
    return %c0_i32, %c0_i32_0 : i32, i32
  }
  func.func @transform_2(%arg0: i32) -> (i32, i32) {
    %c0_i32 = arith.constant 0 : i32
    %c0_i32_0 = arith.constant 0 : i32
    %c0_i32_1 = arith.constant 0 : i32
    return %c0_i32, %c0_i32_0 : i32, i32
  }
  func.func @transform_3(%arg0: i32) -> (i32, i32) {
    %c0_i32 = arith.constant 0 : i32
    %c0_i32_0 = arith.constant 0 : i32
    return %arg0, %c0_i32 : i32, i32
  }
}

</mosaic_0001>

<llo_original>
// kernel: tpu_custom_call.1
$region0: #{tpu_custom_call.1}
  #allocation0 [shape = 'u32[]', space=smem, size = 0x4, offset = 0x4, fixed_abs, tag = 'smem constant byte address 0x4 - core index']
  #allocation1 [shape = 'u32[144,128]{1,0:T(1,128)}', space=vmem, size = 0x12000, scoped, tag = 'internal scratch']
  %s0 = inlined_call_operand.hbm [shape: f32[16,32], index: 0, kind: input, shape index: {}]
  %s1 = inlined_call_operand.vmem [shape: f32[1,32], index: 1, kind: input, shape index: {}]
  %s2 = inlined_call_operand.vmem [shape: f32[1,32], index: 2, kind: input, shape index: {}]
  %s3 = inlined_call_operand.hbm [shape: bf16[16,32], index: 3, kind: output, shape index: {}]
  %s4 = sld [smem:[#allocation0]]
  $region26: #{tpu_custom_call.1} parent=0
    _
  %s6 = ssub.s32 1, %s4
  %s7 = scalar_select 0, %s6, %s4
  $region1: #{tpu_custom_call.1} parent=0
    #allocation2 [shape = 'u8[8192]{0}', space=vmem, size = 0x2000, scoped, tag = 'input window, operand 0, single buffered']
    #allocation3 [shape = 's32[1]{0}', space=sflag, size = 0x4, scoped, tag = 'scoped memory for tpu_custom_call.1']
    #allocation4 [shape = 's32[1]{0}', space=sflag, size = 0x4, scoped, tag = 'scoped memory for tpu_custom_call.1']
    #allocation5 [shape = 'u8[4096]{0}', space=vmem, size = 0x1000, scoped, tag = 'output window, operand 0, single buffered']
    %8 = vsyncpa [#allocation3], 0
    %9 = vsyncpa [#allocation4], 0
    // Predicated region
    $region2: #{tpu_custom_call.1} parent=1 // pred_check
      _
    $region3: #{tpu_custom_call.1} parent=1 // pred_check_branch
      %11 = sbr.rel (0) target = $region5
    $region4: #{tpu_custom_call.1} parent=1 // pred_region
      %s13 = ssub.s32 256, 256
      %14 = vsyncadd [#allocation3], %s13
      %s15 = sshll.u32 [#allocation2], 4
      %s16 = int_to_ptr.vmem [resolvable:$true] %s15
      %21 = dma.hbm_to_vmem [thread:$0]  %s0, 256, %s16, [#allocation3], 128, 128, 8
    $region5: #{tpu_custom_call.1} parent=1 // pred_fallthru
      _
    // Predicated region
    $region6: #{tpu_custom_call.1} parent=1 // pred_check
      _
    $region7: #{tpu_custom_call.1} parent=1 // pred_check_branch
      %23 = sbr.rel (0) target = $region9
    $region8: #{tpu_custom_call.1} parent=1 // pred_region
      _
    $region9: #{tpu_custom_call.1} parent=1 // pred_fallthru
      _
    // Predicated region
    $region10: #{tpu_custom_call.1} parent=1 // pred_check
      _
    $region11: #{tpu_custom_call.1} parent=1 // pred_check_branch
      %25 = sbr.rel (0) target = $region13
    $region12: #{tpu_custom_call.1} parent=1 // pred_region
      _
    $region13: #{tpu_custom_call.1} parent=1 // pred_fallthru
      _
    // Predicated region
    $region14: #{tpu_custom_call.1} parent=1 // pred_check
      _
    $region15: #{tpu_custom_call.1} parent=1 // pred_check_branch
      %27 = sbr.rel (0) target = $region17
    $region16: #{tpu_custom_call.1} parent=1 // pred_region
      %28 = dma.done [#allocation3], 256
    $region17: #{tpu_custom_call.1} parent=1 // pred_fallthru
      _
    %v29 = vld [vmem:[#allocation2] sm:$0xff]
    %v30 = vld [vmem:[#allocation2 + $0x8] sm:$0xff]
    %v31 = vmul.f32 %v29, %v29
    %v32 = vmul.f32 %v30, %v30
    %vm33 = vcmask 261120
    %v34 = vsel %vm33, %v31, 0.0
    %35 = vadd.xlane.f32.xlu0 %v34
    %v36 = vpop.xlane.xlu0 %35
    %v37 = vsel %vm33, %v32, 0.0
    %38 = vadd.xlane.f32.xlu0 %v37
    %v39 = vpop.xlane.xlu0 %38
    %v40 = vrcp.pop 32.0
    %v41 = vmul.f32 %v36, %v40
    %v42 = vmul.f32 %v39, %v40
    %v43 = vadd.f32 %v41, 1e-05
    %v44 = vadd.f32 %v42, 1e-05
    %v45 = vrsqrt.pop %v43
    %v46 = vrsqrt.pop %v44
    %v47 = vmul.f32 %v29, %v45
    %v48 = vmul.f32 %v30, %v46
    %v49 = vld [vmem:[%s1] sm:$0x1]
    %v51 = vlaneseq
    %v52 = vshrl.u32 %v51, 7
    %v53 = vsub.s32 0, %v52
    %v54 = vrot.slane %v49, %v53
    %v56 = vmul.f32 %v47, %v54
    %v57 = vmul.f32 %v48, %v54
    %v58 = vld [vmem:[%s2] sm:$0x1]
    %v60 = vlaneseq
    %v61 = vshrl.u32 %v60, 7
    %v62 = vsub.s32 0, %v61
    %v63 = vrot.slane %v58, %v62
    %v65 = vadd.f32 %v56, %v63
    %v66 = vadd.f32 %v57, %v63
    %v67 = vpack.c.bf16 %v66, %v65
    %v69 = vunpack.c.l.b16 %v67
    %v70 = vunpack.c.h.b16 %v67
    %v71 = vpack.c.b16 %v69, %v69
    %v72 = vpack.c.b16 %v70, %v70
    %vm75 = vcmask 257024
    %76 = vst.msk [vmem:[#allocation5] sm:$0xf] %vm75, %v71
    %77 = vst.msk [vmem:[#allocation5 + $0x4] sm:$0xf] %vm75, %v72
    // Predicated region
    $region18: #{tpu_custom_call.1} parent=1 // pred_check
      _
    $region19: #{tpu_custom_call.1} parent=1 // pred_check_branch
      %79 = sbr.rel (0) target = $region21
    $region20: #{tpu_custom_call.1} parent=1 // pred_region
      %s81 = ssub.s32 128, 128
      %82 = vsyncadd [#allocation4], %s81
      %s83 = sshll.u32 [#allocation5], 4
      %s84 = int_to_ptr.vmem [resolvable:$true] %s83
      %89 = dma.vmem_to_hbm [thread:$0]  %s84, 128, %s3, [#allocation4], 64, 64, 4
    $region21: #{tpu_custom_call.1} parent=1 // pred_fallthru
      _
    // Predicated region
    $region22: #{tpu_custom_call.1} parent=1 // pred_check
      _
    $region23: #{tpu_custom_call.1} parent=1 // pred_check_branch
      %91 = sbr.rel (0) target = $region25
    $region24: #{tpu_custom_call.1} parent=1 // pred_region
      %92 = dma.done [#allocation4], 128
    $region25: #{tpu_custom_call.1} parent=1 // pred_fallthru
      _
    %93 = vsyncpa [#allocation3], 1
    %94 = vsyncpa [#allocation4], 1

</llo_original>
